<compile_context>
chip_gen: v7x
topology: tpu7x:2x2x1
jax: 0.10.0
libtpu: 0.0.40
codegen_flags: <defaults>
</compile_context>

<pallas_src>
from typing import NamedTuple

import jax
import jax.numpy as jnp
from jax.experimental import pallas as pl
from jax.experimental.pallas import tpu as pltpu


# ---------------------------------------------------------------------------
# Helpers
# ---------------------------------------------------------------------------
def _round_up(x, m):
    return ((x + m - 1) // m) * m


def _pad_to(a, axis, target):
    """Zero-pad `a` along `axis` up to `target` (no-op if already there)."""
    if a.shape[axis] == target:
        return a
    widths = [(0, 0)] * a.ndim
    widths[axis] = (0, target - a.shape[axis])
    return jnp.pad(a, widths)


def _vmem_capacity_bytes():
    """Physical VMEM of the attached TPU generation (fallback: 128 MiB)."""
    try:
        info = pltpu.get_tpu_info()
        cap = getattr(info, "vmem_capacity_bytes", None)
        if cap:
            return int(cap)
    except Exception:
        pass
    return 128 * 1024 * 1024


def _plan_m(m, cap=512):
    """Row-tile plan: single tile up to `cap` rows (bf16 -> multiples of 16)."""
    if m <= cap:
        tm = _round_up(m, 16)
        return tm, tm                       # single M tile: weights stream once
    return cap, _round_up(m, cap)


def _plan_k(k_p, small_vmem):
    """K plan: single step when it fits the generation's VMEM budget."""
    k_single_max = 4096 if small_vmem else 8192
    if k_p <= k_single_max:
        return k_p, 1
    for tk in (2048, 1024, 512, 256, 128):  # K_p is a multiple of 256
        if k_p % tk == 0:
            return tk, k_p // tk
    return k_p, 1


# ---------------------------------------------------------------------------
# Kernels
# ---------------------------------------------------------------------------
def _shared_single_k_kernel(x_ref, w_ref, b_ref, o_ref):
    """Shared head, K fits one step.  Blocks: x (tm,K), w (K,tn), b (1,tn)."""
    acc = jnp.dot(x_ref[...], w_ref[...], preferred_element_type=jnp.float32)
    o_ref[...] = (acc + b_ref[...]).astype(o_ref.dtype)


def _shared_tiled_k_kernel(x_ref, w_ref, b_ref, o_ref, acc_ref):
    """Shared head, tiled K reduction (grid (n, m, k), k innermost)."""
    k = pl.program_id(2)

    @pl.when(k == 0)
    def _():
        acc_ref[...] = jnp.zeros_like(acc_ref)

    acc_ref[...] += jnp.dot(x_ref[...], w_ref[...],
                            preferred_element_type=jnp.float32)

    @pl.when(k == pl.num_programs(2) - 1)
    def _():
        o_ref[...] = (acc_ref[...] + b_ref[...]).astype(o_ref.dtype)


def _individual_single_k_kernel(x_ref, w_ref, b_ref, o_ref):
    """Individual head, K fits one step.

    Blocks: x (tb, K) -- feature f's K-slice of [B, F*K_p]
            w (1, K, tn), b (1, 1, tn), o (1, tb, tn)
    """
    acc = jnp.dot(x_ref[...], w_ref[0], preferred_element_type=jnp.float32)
    o_ref[0] = (acc + b_ref[0]).astype(o_ref.dtype)


def _individual_tiled_k_kernel(x_ref, w_ref, b_ref, o_ref, acc_ref):
    """Individual head, tiled K reduction (grid (f, n, b, k), k innermost)."""
    k = pl.program_id(3)

    @pl.when(k == 0)
    def _():
        acc_ref[...] = jnp.zeros_like(acc_ref)

    acc_ref[...] += jnp.dot(x_ref[...], w_ref[0],
                            preferred_element_type=jnp.float32)

    @pl.when(k == pl.num_programs(3) - 1)
    def _():
        o_ref[0] = (acc_ref[...] + b_ref[0]).astype(o_ref.dtype)


# ---------------------------------------------------------------------------
# Load-time parameter preparation (call ONCE, not per forward)
# ---------------------------------------------------------------------------
class SharedHeadParams(NamedTuple):
    w: jax.Array          # (K_p, N_p) compute_dtype, pre-transposed + padded
    b: jax.Array          # (1, N_p) f32, padded
    d_input: int
    d_output: int


class IndividualHeadParams(NamedTuple):
    w: jax.Array          # (F, K_p, N_p) compute_dtype, pre-transposed + padded
    b: jax.Array          # (F, 1, N_p) f32, padded
    d_input: int
    d_output: int


def prepare_flatten_head_shared(w_out_in, bias, *, compute_dtype=jnp.bfloat16):
    """w_out_in: [d_output, d_input] (PyTorch nn.Linear layout), bias: [d_output]."""
    d_output, d_input = w_out_in.shape
    K_p = _round_up(d_input, 256)          # MXU-friendly K padding
    N_p = _round_up(d_output, 128)         # lane-dense output
    w = _pad_to(_pad_to(jnp.asarray(w_out_in).T, 0, K_p), 1, N_p)
    w = w.astype(compute_dtype)
    b = _pad_to(jnp.asarray(bias).reshape(1, d_output), 1, N_p)
    b = b.astype(jnp.float32)
    return SharedHeadParams(w, b, d_input, d_output)


def prepare_flatten_head_individual(w_f_out_in, biases, *,
                                    compute_dtype=jnp.bfloat16):
    """w_f_out_in: [F, d_output, d_input] (per-feature nn.Linear), biases: [F, d_output]."""
    n_features, d_output, d_input = w_f_out_in.shape
    K_p = _round_up(d_input, 256)
    N_p = _round_up(d_output, 128)
    w = jnp.asarray(w_f_out_in).transpose(0, 2, 1)       # (F, d_input, d_output)
    w = _pad_to(_pad_to(w, 1, K_p), 2, N_p).astype(compute_dtype)
    b = _pad_to(jnp.asarray(biases), 1, N_p).astype(jnp.float32)
    b = b.reshape(n_features, 1, N_p)
    return IndividualHeadParams(w, b, d_input, d_output)


# ---------------------------------------------------------------------------
# Forward wrappers
# ---------------------------------------------------------------------------
def flatten_head_shared(x, params: SharedHeadParams, *,
                        compute_dtype=jnp.bfloat16, out_dtype=None):
    """Shared (individual=False) head.  x: [B, F, d_model, n_patches]."""
    B, F, D, P = x.shape
    d_input, d_output = params.d_input, params.d_output
    assert D * P == d_input, "d_model * n_patches must equal d_input"
    K_p, N_p = params.w.shape
    out_dtype = x.dtype if out_dtype is None else out_dtype
    M = B * F

    small_vmem = _vmem_capacity_bytes() < 100 * 1024 * 1024   # v7x-like

    # ---- tile plan --------------------------------------------------------
    tm, M_p = _plan_m(M)
    tn = 256 if N_p % 256 == 0 else 128
    tk, n_k = _plan_k(K_p, small_vmem)
    # v7x has 2 TensorCores: keep >= 2 parallel grid steps when possible.
    if small_vmem and (M_p // tm) * (N_p // tn) == 1 and N_p >= 256:
        tn = 128

    # ---- glue: Flatten(start_dim=-2) is a row-major reshape; pads are zeros.
    xf = x.reshape(M, d_input)
    xf = _pad_to(_pad_to(xf, 0, M_p), 1, K_p).astype(compute_dtype)

    # ---- cost / VMEM budget ------------------------------------------------
    itc = jnp.dtype(compute_dtype).itemsize
    ito = jnp.dtype(out_dtype).itemsize
    cost = pl.CostEstimate(
        flops=2 * M_p * K_p * N_p,
        transcendentals=0,
        bytes_accessed=M_p * K_p * itc + K_p * N_p * itc + N_p * 4
                       + M_p * N_p * ito)
    est = 2 * (tm * tk * itc + tk * tn * itc + 8 * tn * 4 + tm * tn * ito) \
        + tm * tn * 4
    cap = (48 if small_vmem else 100) * 1024 * 1024
    vmem_limit = int(min(max(2 * est, 8 * 1024 * 1024), cap))

    if n_k == 1:
        # Single K step: weight strip stays VMEM-resident, no accumulator.
        grid = (N_p // tn, M_p // tm)           # weight-stationary per column
        out = pl.pallas_call(
            _shared_single_k_kernel,
            out_shape=jax.ShapeDtypeStruct((M_p, N_p), out_dtype),
            grid_spec=pltpu.PrefetchScalarGridSpec(
                num_scalar_prefetch=0,
                grid=grid,
                in_specs=[
                    pl.BlockSpec((tm, K_p), lambda n, m: (m, 0)),
                    pl.BlockSpec((K_p, tn), lambda n, m: (0, n)),
                    pl.BlockSpec((1, tn), lambda n, m: (0, n)),
                ],
                out_specs=pl.BlockSpec((tm, tn), lambda n, m: (m, n)),
            ),
            compiler_params=pltpu.CompilerParams(
                dimension_semantics=("parallel", "parallel"),
                vmem_limit_bytes=vmem_limit),
            cost_estimate=cost,
        )(xf, params.w, params.b)
    else:
        grid = (N_p // tn, M_p // tm, n_k)
        out = pl.pallas_call(
            _shared_tiled_k_kernel,
            out_shape=jax.ShapeDtypeStruct((M_p, N_p), out_dtype),
            grid_spec=pltpu.PrefetchScalarGridSpec(
                num_scalar_prefetch=0,
                grid=grid,
                in_specs=[
                    pl.BlockSpec((tm, tk), lambda n, m, k: (m, k)),
                    pl.BlockSpec((tk, tn), lambda n, m, k: (k, n)),
                    pl.BlockSpec((1, tn), lambda n, m, k: (0, n)),
                ],
                out_specs=pl.BlockSpec((tm, tn), lambda n, m, k: (m, n)),
                scratch_shapes=[pltpu.VMEM((tm, tn), jnp.float32)],
            ),
            compiler_params=pltpu.CompilerParams(
                dimension_semantics=("parallel", "parallel", "arbitrary"),
                vmem_limit_bytes=vmem_limit),
            cost_estimate=cost,
        )(xf, params.w, params.b)

    # Dropout: identity in eval mode.
    return out[:M, :d_output].reshape(B, F, d_output)


def flatten_head_individual(x, params: IndividualHeadParams, *,
                            compute_dtype=jnp.bfloat16, out_dtype=None):
    """Individual (individual=True) head.  x: [B, F, d_model, n_patches]."""
    B, F, D, P = x.shape
    d_input, d_output = params.d_input, params.d_output
    Fw, K_p, N_p = params.w.shape
    assert Fw == F and D * P == d_input
    out_dtype = x.dtype if out_dtype is None else out_dtype

    small_vmem = _vmem_capacity_bytes() < 100 * 1024 * 1024   # v7x-like

    # ---- tile plan --------------------------------------------------------
    tb, B_p = _plan_m(B)
    tn = 256 if N_p % 256 == 0 else 128
    tk, n_k = _plan_k(K_p, small_vmem)
    kblocks = n_k

    # ---- glue: NO activation transpose.  x stays [B, F*K_p]; the BlockSpec
    # selects feature f's contiguous K-slice via a lane-axis block index.
    if K_p == d_input:
        xf = x.reshape(B, F * d_input)
    else:
        xf = _pad_to(x.reshape(B, F, d_input), 2, K_p).reshape(B, F * K_p)
    xf = _pad_to(xf, 0, B_p).astype(compute_dtype)

    # ---- cost / VMEM budget ------------------------------------------------
    itc = jnp.dtype(compute_dtype).itemsize
    ito = jnp.dtype(out_dtype).itemsize
    cost = pl.CostEstimate(
        flops=2 * B_p * F * K_p * N_p,
        transcendentals=0,
        bytes_accessed=B_p * F * K_p * itc + F * K_p * N_p * itc
                       + F * N_p * 4 + F * B_p * N_p * ito)
    est = 2 * (tb * tk * itc + tk * tn * itc + 8 * tn * 4 + tb * tn * ito) \
        + tb * tn * 4
    cap = (48 if small_vmem else 100) * 1024 * 1024
    vmem_limit = int(min(max(2 * est, 8 * 1024 * 1024), cap))

    if n_k == 1:
        # f outermost so the per-feature weight block stays resident while the
        # inner (n, b-block) axes sweep; all axes independent -> parallel.
        grid = (F, N_p // tn, B_p // tb)
        out = pl.pallas_call(
            _individual_single_k_kernel,
            out_shape=jax.ShapeDtypeStruct((F, B_p, N_p), out_dtype),
            grid_spec=pltpu.PrefetchScalarGridSpec(
                num_scalar_prefetch=0,
                grid=grid,
                in_specs=[
                    pl.BlockSpec((tb, K_p), lambda f, n, bb: (bb, f)),
                    pl.BlockSpec((1, K_p, tn), lambda f, n, bb: (f, 0, n)),
                    pl.BlockSpec((1, 1, tn), lambda f, n, bb: (f, 0, n)),
                ],
                out_specs=pl.BlockSpec((1, tb, tn),
                                       lambda f, n, bb: (f, bb, n)),
            ),
            compiler_params=pltpu.CompilerParams(
                dimension_semantics=("parallel", "parallel", "parallel"),
                vmem_limit_bytes=vmem_limit),
            cost_estimate=cost,
        )(xf, params.w, params.b)
    else:
        grid = (F, N_p // tn, B_p // tb, n_k)
        out = pl.pallas_call(
            _individual_tiled_k_kernel,
            out_shape=jax.ShapeDtypeStruct((F, B_p, N_p), out_dtype),
            grid_spec=pltpu.PrefetchScalarGridSpec(
                num_scalar_prefetch=0,
                grid=grid,
                in_specs=[
                    pl.BlockSpec((tb, tk),
                                 lambda f, n, bb, k: (bb, f * kblocks + k)),
                    pl.BlockSpec((1, tk, tn), lambda f, n, bb, k: (f, k, n)),
                    pl.BlockSpec((1, 1, tn), lambda f, n, bb, k: (f, 0, n)),
                ],
                out_specs=pl.BlockSpec((1, tb, tn),
                                       lambda f, n, bb, k: (f, bb, n)),
                scratch_shapes=[pltpu.VMEM((tb, tn), jnp.float32)],
            ),
            compiler_params=pltpu.CompilerParams(
                dimension_semantics=("parallel", "parallel", "parallel",
                                     "arbitrary"),
                vmem_limit_bytes=vmem_limit),
            cost_estimate=cost,
        )(xf, params.w, params.b)

    # Dropout: identity in eval mode.  Only the small output is transposed
    # back (== torch.stack(x_out, dim=1)).
    return out[:, :B, :d_output].transpose(1, 0, 2)


# ---------------------------------------------------------------------------
# Main
# ---------------------------------------------------------------------------
if __name__ == "__main__":
    key = jax.random.PRNGKey(0)

    # Small shapes consistent with the module:
    B, F, D, P = 2, 4, 16, 8          # batch, n_features, d_model, n_patches
    d_input = D * P                   # 128
    d_output = 32

    k_x, k_w, k_b, k_wi, k_bi = jax.random.split(key, 5)
    x = jax.random.normal(k_x, (B, F, D, P), dtype=jnp.float32)

    # Synthetic params mirroring nn.Linear init bounds (PyTorch layout).
    bound = 1.0 / (d_input ** 0.5)
    w_shared = jax.random.uniform(k_w, (d_output, d_input),
                                  minval=-bound, maxval=bound, dtype=jnp.float32)
    b_shared = jax.random.uniform(k_b, (d_output,),
                                  minval=-bound, maxval=bound, dtype=jnp.float32)
    w_indiv = jax.random.uniform(k_wi, (F, d_output, d_input),
                                 minval=-bound, maxval=bound, dtype=jnp.float32)
    b_indiv = jax.random.uniform(k_bi, (F, d_output),
                                 minval=-bound, maxval=bound, dtype=jnp.float32)

    # Load-time prep (transpose + pad + bf16 cast happen ONCE, not per call).
    params_shared = prepare_flatten_head_shared(w_shared, b_shared)
    params_indiv = prepare_flatten_head_individual(w_indiv, b_indiv)

    # References with the same bf16 operand rounding + f32 accumulation.
    xr = x.reshape(B, F, d_input)
    xq = xr.astype(jnp.bfloat16).astype(jnp.float32)
    wq_s = w_shared.T.astype(jnp.bfloat16).astype(jnp.float32)
    wq_i = w_indiv.transpose(0, 2, 1).astype(jnp.bfloat16).astype(jnp.float32)
    ref_shared = jnp.einsum("bfk,ko->bfo", xq, wq_s) + b_shared
    ref_indiv = jnp.einsum("bfk,fko->bfo", xq, wq_i) + b_indiv[None, :, :]

    # ---- individual=False (default) ----
    out_shared = jax.block_until_ready(flatten_head_shared(x, params_shared))
    assert out_shared.shape == (B, F, d_output)
    assert out_shared.dtype == x.dtype
    assert jnp.allclose(out_shared, ref_shared, atol=1e-2, rtol=1e-2)

    # ---- individual=True ----
    out_indiv = jax.block_until_ready(flatten_head_individual(x, params_indiv))
    assert out_indiv.shape == (B, F, d_output)
    assert out_indiv.dtype == x.dtype
    assert jnp.allclose(out_indiv, ref_indiv, atol=1e-2, rtol=1e-2)

    print("KERNEL_OK")
</pallas_src>

<mosaic_0001>
module attributes {stable_mosaic.version = 11 : i64} {
  func.func @_shared_single_k_kernel(%arg0: i32, %arg1: i32, %arg2: memref<16x256xbf16, #tpu.memory_space<vmem>>, %arg3: memref<256x128xbf16, #tpu.memory_space<vmem>>, %arg4: memref<1x128xf32, #tpu.memory_space<vmem>>, %arg5: memref<16x128xf32, #tpu.memory_space<vmem>>) attributes {dimension_semantics = [#tpu.dimension_semantics<parallel>, #tpu.dimension_semantics<parallel>], iteration_bounds = array<i64: 1, 1>, scalar_prefetch = 0 : i64, scratch_operands = 0 : i64, tpu.core_type = #tpu.core_type<tc>, window_params = [{transform_indices = @transform_0, window_bounds = array<i64: 16, 256>}, {transform_indices = @transform_1, window_bounds = array<i64: 256, 128>}, {transform_indices = @transform_2, window_bounds = array<i64: 1, 128>}, {transform_indices = @transform_3, window_bounds = array<i64: 16, 128>}]} {
    %c0 = arith.constant 0 : index
    %c0_0 = arith.constant 0 : index
    %0 = vector.load %arg2[%c0, %c0_0] : memref<16x256xbf16, #tpu.memory_space<vmem>>, vector<16x256xbf16>
    %c0_1 = arith.constant 0 : index
    %c0_2 = arith.constant 0 : index
    %1 = vector.load %arg3[%c0_1, %c0_2] : memref<256x128xbf16, #tpu.memory_space<vmem>>, vector<256x128xbf16>
    %cst = arith.constant dense<0.000000e+00> : vector<16x128xf32>
    %2 = tpu.matmul %0, %1, %cst {dimension_numbers = #tpu.dot_dimension_numbers<[1], [0], [0], [1], [0, 0, 1, 1], [], []>} : vector<16x256xbf16>, vector<256x128xbf16>, vector<16x128xf32> -> vector<16x128xf32>
    %c0_3 = arith.constant 0 : index
    %c0_4 = arith.constant 0 : index
    %3 = vector.load %arg4[%c0_3, %c0_4] : memref<1x128xf32, #tpu.memory_space<vmem>>, vector<1x128xf32>
    %4 = vector.broadcast %3 : vector<1x128xf32> to vector<16x128xf32>
    %5 = arith.addf %2, %4 : vector<16x128xf32>
    %c0_5 = arith.constant 0 : index
    %c0_6 = arith.constant 0 : index
    %6 = vector.load %arg5[%c0_5, %c0_6] : memref<16x128xf32, #tpu.memory_space<vmem>>, vector<16x128xf32>
    tpu.vector_store %arg5[%c0_5, %c0_6], %5 {strides = array<i32>} : memref<16x128xf32, #tpu.memory_space<vmem>>, vector<16x128xf32>,
    return
  }
  func.func @transform_0(%arg0: i32, %arg1: i32) -> (i32, i32) {
    %c0_i32 = arith.constant 0 : i32
    %c0_i32_0 = arith.constant 0 : i32
    return %arg1, %c0_i32 : i32, i32
  }
  func.func @transform_1(%arg0: i32, %arg1: i32) -> (i32, i32) {
    %c0_i32 = arith.constant 0 : i32
    %c0_i32_0 = arith.constant 0 : i32
    return %c0_i32, %arg0 : i32, i32
  }
  func.func @transform_2(%arg0: i32, %arg1: i32) -> (i32, i32) {
    %c0_i32 = arith.constant 0 : i32
    %c0_i32_0 = arith.constant 0 : i32
    return %c0_i32, %arg0 : i32, i32
  }
  func.func @transform_3(%arg0: i32, %arg1: i32) -> (i32, i32) {
    %c0_i32 = arith.constant 0 : i32
    return %arg1, %arg0 : i32, i32
  }
}

</mosaic_0001>

<llo_original>
// kernel: tpu_custom_call.1
$region0: #{tpu_custom_call.1}
  #allocation0 [shape = 'u32[]', space=smem, size = 0x4, offset = 0x4, fixed_abs, tag = 'smem constant byte address 0x4 - core index']
  #allocation1 [shape = 'u32[144,128]{1,0:T(1,128)}', space=vmem, size = 0x12000, scoped, tag = 'internal scratch']
  %s0 = inlined_call_operand.hbm [shape: bf16[16,256], index: 0, kind: input, shape index: {}]
  %s1 = inlined_call_operand.hbm [shape: bf16[256,128], index: 1, kind: input, shape index: {}]
  %s2 = inlined_call_operand.vmem [shape: f32[1,128], index: 2, kind: input, shape index: {}]
  %s3 = inlined_call_operand.hbm [shape: f32[16,128], index: 3, kind: output, shape index: {}]
  %s4 = sld [smem:[#allocation0]]
  $region30: #{tpu_custom_call.1} parent=0
    _
  %s6 = ssub.s32 1, %s4
  %s7 = scalar_select 0, %s6, %s4
  $region1: #{tpu_custom_call.1} parent=0
    #allocation2 [shape = 'u8[8192]{0}', space=vmem, size = 0x2000, scoped, tag = 'input window, operand 0, single buffered']
    #allocation3 [shape = 's32[1]{0}', space=sflag, size = 0x4, scoped, tag = 'scoped memory for tpu_custom_call.1']
    #allocation4 [shape = 's32[1]{0}', space=sflag, size = 0x4, scoped, tag = 'scoped memory for tpu_custom_call.1']
    #allocation5 [shape = 'u8[65536]{0}', space=vmem, size = 0x10000, scoped, tag = 'input window, operand 1, single buffered']
    #allocation6 [shape = 's32[1]{0}', space=sflag, size = 0x4, scoped, tag = 'scoped memory for tpu_custom_call.1']
    #allocation7 [shape = 'u8[8192]{0}', space=vmem, size = 0x2000, scoped, tag = 'output window, operand 0, single buffered']
    %8 = vsyncpa [#allocation3], 0
    %9 = vsyncpa [#allocation6], 0
    %10 = vsyncpa [#allocation4], 0
    // Predicated region
    $region2: #{tpu_custom_call.1} parent=1 // pred_check
      _
    $region3: #{tpu_custom_call.1} parent=1 // pred_check_branch
      %12 = sbr.rel (0) target = $region5
    $region4: #{tpu_custom_call.1} parent=1 // pred_region
      %s14 = ssub.s32 256, 256
      %15 = vsyncadd [#allocation3], %s14
      %s16 = sshll.u32 [#allocation2], 4
      %s17 = int_to_ptr.vmem [resolvable:$true] %s16
      %22 = dma.hbm_to_vmem [thread:$0]  %s0, 256, %s17, [#allocation3], 128, 128, 8
    $region5: #{tpu_custom_call.1} parent=1 // pred_fallthru
      _
    // Predicated region
    $region6: #{tpu_custom_call.1} parent=1 // pred_check
      _
    $region7: #{tpu_custom_call.1} parent=1 // pred_check_branch
      %24 = sbr.rel (0) target = $region9
    $region8: #{tpu_custom_call.1} parent=1 // pred_region
      %s26 = ssub.s32 2048, 2048
      %27 = vsyncadd [#allocation6], %s26
      %s28 = sshll.u32 [#allocation5], 4
      %s29 = int_to_ptr.vmem [resolvable:$true] %s28
      %34 = dma.hbm_to_vmem [thread:$0]  %s1, 2048, %s29, [#allocation6], 64, 64, 4
    $region9: #{tpu_custom_call.1} parent=1 // pred_fallthru
      _
    // Predicated region
    $region10: #{tpu_custom_call.1} parent=1 // pred_check
      _
    $region11: #{tpu_custom_call.1} parent=1 // pred_check_branch
      %36 = sbr.rel (0) target = $region13
    $region12: #{tpu_custom_call.1} parent=1 // pred_region
      _
    $region13: #{tpu_custom_call.1} parent=1 // pred_fallthru
      _
    // Predicated region
    $region14: #{tpu_custom_call.1} parent=1 // pred_check
      _
    $region15: #{tpu_custom_call.1} parent=1 // pred_check_branch
      %38 = sbr.rel (0) target = $region17
    $region16: #{tpu_custom_call.1} parent=1 // pred_region
      %39 = dma.done [#allocation3], 256
    $region17: #{tpu_custom_call.1} parent=1 // pred_fallthru
      _
    // Predicated region
    $region18: #{tpu_custom_call.1} parent=1 // pred_check
      _
    $region19: #{tpu_custom_call.1} parent=1 // pred_check_branch
      %41 = sbr.rel (0) target = $region21
    $region20: #{tpu_custom_call.1} parent=1 // pred_region
      %42 = dma.done [#allocation6], 2048
    $region21: #{tpu_custom_call.1} parent=1 // pred_fallthru
      _
    %v44 = vld [vmem:[#allocation2] sm:$0xff]
    %v45 = vld [vmem:[#allocation2 + $0x8] sm:$0xff]
    %v46 = vld [vmem:[#allocation5] sm:$0xf]
    %v47 = vld [vmem:[#allocation5 + $0x4] sm:$0xf]
    %v48 = vld [vmem:[#allocation5 + $0x8] sm:$0xf]
    %v49 = vld [vmem:[#allocation5 + $0xc] sm:$0xf]
    %v50 = vld [vmem:[#allocation5 + $0x10] sm:$0xf]
    %v51 = vld [vmem:[#allocation5 + $0x14] sm:$0xf]
    %v52 = vld [vmem:[#allocation5 + $0x18] sm:$0xf]
    %v53 = vld [vmem:[#allocation5 + $0x1c] sm:$0xf]
    %v54 = vld [vmem:[#allocation5 + $0x20] sm:$0xf]
    %v55 = vld [vmem:[#allocation5 + $0x24] sm:$0xf]
    %v56 = vld [vmem:[#allocation5 + $0x28] sm:$0xf]
    %v57 = vld [vmem:[#allocation5 + $0x2c] sm:$0xf]
    %v58 = vld [vmem:[#allocation5 + $0x30] sm:$0xf]
    %v59 = vld [vmem:[#allocation5 + $0x34] sm:$0xf]
    %v60 = vld [vmem:[#allocation5 + $0x38] sm:$0xf]
    %v61 = vld [vmem:[#allocation5 + $0x3c] sm:$0xf]
    %v62 = vld [vmem:[#allocation5 + $0x40] sm:$0xf]
    %v63 = vld [vmem:[#allocation5 + $0x44] sm:$0xf]
    %v64 = vld [vmem:[#allocation5 + $0x48] sm:$0xf]
    %v65 = vld [vmem:[#allocation5 + $0x4c] sm:$0xf]
    %v66 = vld [vmem:[#allocation5 + $0x50] sm:$0xf]
    %v67 = vld [vmem:[#allocation5 + $0x54] sm:$0xf]
    %v68 = vld [vmem:[#allocation5 + $0x58] sm:$0xf]
    %v69 = vld [vmem:[#allocation5 + $0x5c] sm:$0xf]
    %v70 = vld [vmem:[#allocation5 + $0x60] sm:$0xf]
    %v71 = vld [vmem:[#allocation5 + $0x64] sm:$0xf]
    %v72 = vld [vmem:[#allocation5 + $0x68] sm:$0xf]
    %v73 = vld [vmem:[#allocation5 + $0x6c] sm:$0xf]
    %v74 = vld [vmem:[#allocation5 + $0x70] sm:$0xf]
    %v75 = vld [vmem:[#allocation5 + $0x74] sm:$0xf]
    %v76 = vld [vmem:[#allocation5 + $0x78] sm:$0xf]
    %v77 = vld [vmem:[#allocation5 + $0x7c] sm:$0xf]
    %v78 = vld [vmem:[%s2] sm:$0x1]
    %v80 = vlaneseq
    %v81 = vshrl.u32 %v80, 7
    %v82 = vsub.s32 0, %v81
    %v83 = vrot.slane %v78, %v82
    %v87 = vunpack.c.l.b16 %v44
    %v88 = vunpack.c.h.b16 %v44
    %v89 = vunpack.c.l.b16 %v45
    %v90 = vunpack.c.h.b16 %v45
    %v91 = vpack.c.b16 %v89, %v87
    %v92 = vpack.c.b16 %v90, %v88
    %v127 = vunpack.c.l.b16 %v46
    %v128 = vunpack.c.l.b16 %v47
    %v129 = vunpack.c.l.b16 %v48
    %v130 = vunpack.c.l.b16 %v49
    %v131 = vunpack.c.l.b16 %v50
    %v132 = vunpack.c.l.b16 %v51
    %v133 = vunpack.c.l.b16 %v52
    %v134 = vunpack.c.l.b16 %v53
    %v135 = vunpack.c.l.b16 %v54
    %v136 = vunpack.c.l.b16 %v55
    %v137 = vunpack.c.l.b16 %v56
    %v138 = vunpack.c.l.b16 %v57
    %v139 = vunpack.c.l.b16 %v58
    %v140 = vunpack.c.l.b16 %v59
    %v141 = vunpack.c.l.b16 %v60
    %v142 = vunpack.c.l.b16 %v61
    %v143 = vunpack.c.l.b16 %v62
    %v144 = vunpack.c.l.b16 %v63
    %v145 = vunpack.c.l.b16 %v64
    %v146 = vunpack.c.l.b16 %v65
    %v147 = vunpack.c.l.b16 %v66
    %v148 = vunpack.c.l.b16 %v67
    %v149 = vunpack.c.l.b16 %v68
    %v150 = vunpack.c.l.b16 %v69
    %v151 = vunpack.c.l.b16 %v70
    %v152 = vunpack.c.l.b16 %v71
    %v153 = vunpack.c.l.b16 %v72
    %v154 = vunpack.c.l.b16 %v73
    %v155 = vunpack.c.l.b16 %v74
    %v156 = vunpack.c.l.b16 %v75
    %v157 = vunpack.c.l.b16 %v76
    %v158 = vunpack.c.l.b16 %v77
    %v159 = vpack.c.b16 %v128, %v127
    %v160 = vpack.c.b16 %v130, %v129
    %v161 = vpack.c.b16 %v132, %v131
    %v162 = vpack.c.b16 %v134, %v133
    %v163 = vpack.c.b16 %v136, %v135
    %v164 = vpack.c.b16 %v138, %v137
    %v165 = vpack.c.b16 %v140, %v139
    %v166 = vpack.c.b16 %v142, %v141
    %v167 = vpack.c.b16 %v144, %v143
    %v168 = vpack.c.b16 %v146, %v145
    %v169 = vpack.c.b16 %v148, %v147
    %v170 = vpack.c.b16 %v150, %v149
    %v171 = vpack.c.b16 %v152, %v151
    %v172 = vpack.c.b16 %v154, %v153
    %v173 = vpack.c.b16 %v156, %v155
    %v174 = vpack.c.b16 %v158, %v157
    %191 = vmatprep.subr.bf16.mxu0 0
    %192 = vmatpush1.bf16.msra.mxu0 %v159
    %193 = vmatprep.subr.bf16.mxu0 0
    %194 = vmatpush1.bf16.msra.mxu0 %v160
    %195 = vmatprep.subr.bf16.mxu0 0
    %196 = vmatpush1.bf16.msra.mxu0 %v161
    %197 = vmatprep.subr.bf16.mxu0 0
    %198 = vmatpush1.bf16.msra.mxu0 %v162
    %199 = vmatprep.subr.bf16.mxu0 0
    %200 = vmatpush1.bf16.msra.mxu0 %v163
    %201 = vmatprep.subr.bf16.mxu0 0
    %202 = vmatpush1.bf16.msra.mxu0 %v164
    %203 = vmatprep.subr.bf16.mxu0 0
    %204 = vmatpush1.bf16.msra.mxu0 %v165
    %205 = vmatprep.subr.bf16.mxu0 0
    %206 = vmatpush1.bf16.msra.mxu0 %v166
    %207 = vmatprep.subr.bf16.mxu0 0
    %208 = vmatpush1.bf16.msra.mxu0 %v167
    %209 = vmatprep.subr.bf16.mxu0 0
    %210 = vmatpush1.bf16.msra.mxu0 %v168
    %211 = vmatprep.subr.bf16.mxu0 0
    %212 = vmatpush1.bf16.msra.mxu0 %v169
    %213 = vmatprep.subr.bf16.mxu0 0
    %214 = vmatpush1.bf16.msra.mxu0 %v170
    %215 = vmatprep.subr.bf16.mxu0 0
    %216 = vmatpush1.bf16.msra.mxu0 %v171
    %217 = vmatprep.subr.bf16.mxu0 0
    %218 = vmatpush1.bf16.msra.mxu0 %v172
    %219 = vmatprep.subr.bf16.mxu0 0
    %220 = vmatpush1.bf16.msra.mxu0 %v173
    %221 = vmatprep.subr.bf16.mxu0 0
    %222 = vmatpush1.bf16.msra.mxu0 %v174
    %223 = vmatprep.mubr.bf16.mxu0 %v92
    %224 = vmatmul.mubr.bf16.gmra.mrb[0].mxu0 %v91
    %v225 = vpop.f32.mrb[0].mxu0
    %v226 = vadd.f32 %v83, %v225
    %v227 = vpop.f32.mrb[0].mxu0
    %v228 = vpop.f32.mrb[0].mxu0
    %v229 = vadd.f32 %v83, %v228
    %v230 = vpop.f32.mrb[0].mxu0
    %231 = vdwg.mxu0
    %232 = vst [vmem:[#allocation7] sm:$0xff] %v226
    %233 = vst [vmem:[#allocation7 + $0x8] sm:$0xff] %v229
    // Predicated region
    $region22: #{tpu_custom_call.1} parent=1 // pred_check
      _
    $region23: #{tpu_custom_call.1} parent=1 // pred_check_branch
      %235 = sbr.rel (0) target = $region25
    $region24: #{tpu_custom_call.1} parent=1 // pred_region
      %s237 = ssub.s32 256, 256
      %238 = vsyncadd [#allocation4], %s237
      %s239 = sshll.u32 [#allocation7], 4
      %s240 = int_to_ptr.vmem [resolvable:$true] %s239
      %245 = dma.vmem_to_hbm [thread:$0]  %s240, 256, %s3, [#allocation4], 128, 128, 8
    $region25: #{tpu_custom_call.1} parent=1 // pred_fallthru
      _
    // Predicated region
    $region26: #{tpu_custom_call.1} parent=1 // pred_check
      _
    $region27: #{tpu_custom_call.1} parent=1 // pred_check_branch
      %247 = sbr.rel (0) target = $region29
    $region28: #{tpu_custom_call.1} parent=1 // pred_region
      %248 = dma.done [#allocation4], 256
    $region29: #{tpu_custom_call.1} parent=1 // pred_fallthru
      _
    %249 = vsyncpa [#allocation3], 1
    %250 = vsyncpa [#allocation6], 1
    %251 = vsyncpa [#allocation4], 1

</llo_original>
